<compile_context>
chip_gen: v7x
topology: tpu7x:2x2x1
jax: 0.10.0
libtpu: 0.0.40
codegen_flags: <defaults>
</compile_context>

<pallas_src>
import jax
import jax.numpy as jnp
from jax.experimental import pallas as pl
from jax.experimental.pallas import tpu as pltpu

# small shapes consistent with the surrounding ViT (16x16 image, 4x4 patches,
# embed_dim=32, batch=2)
N_PATCHES = 16
EMBED     = 32
SEQ       = N_PATCHES + 1
BATCH     = 2


def _pos_embed_broadcast_kernel(pos_ref, out_ref):
    # pos_ref: [1, S, E]   out_ref: [B, S, E]
    # Repeat over the batch (leading) axis only: lowers to B identical
    # full-width stores of the VMEM-resident table.
    out_ref[...] = jnp.broadcast_to(pos_ref[...], out_ref.shape)


def positional_embedding_forward(x, pos_embed):
    """Equivalent of PositionalEmbedding.forward: pos_embed.repeat(B, 1, 1)."""
    b = x.shape[0]                       # the torch forward only uses x.size(0)
    _, s, e = pos_embed.shape
    return pl.pallas_call(
        _pos_embed_broadcast_kernel,
        out_shape=jax.ShapeDtypeStruct((b, s, e), pos_embed.dtype),
        in_specs=[pl.BlockSpec(memory_space=pltpu.MemorySpace.VMEM)],
        out_specs=pl.BlockSpec(memory_space=pltpu.MemorySpace.VMEM),
    )(pos_embed)


if __name__ == "__main__":
    key = jax.random.PRNGKey(0)
    k_pos, k_x = jax.random.split(key)

    # The torch module initializes pos_embed to zeros; use a deterministic
    # random table here so the correctness check is non-trivial.
    pos_embed = 0.02 * jax.random.normal(k_pos, (1, SEQ, EMBED), jnp.float32)
    # x is only consulted for its batch size in the reference forward.
    x = jax.random.normal(k_x, (BATCH, SEQ, EMBED), jnp.float32)

    fwd = jax.jit(positional_embedding_forward)
    out = jax.block_until_ready(fwd(x, pos_embed))

    ref = jnp.broadcast_to(pos_embed, (BATCH, SEQ, EMBED))   # == repeat(B,1,1)
    assert out.shape == (BATCH, SEQ, EMBED), out.shape
    assert bool(jnp.all(jnp.isfinite(out)))
    assert bool(jnp.all(out == ref))
    print("KERNEL_OK")
</pallas_src>

<mosaic_0001>
module attributes {stable_mosaic.version = 11 : i64} {
  func.func @_pos_embed_broadcast_kernel(%arg0: memref<1x17x32xf32, #tpu.memory_space<vmem>>, %arg1: memref<2x17x32xf32, #tpu.memory_space<vmem>>) attributes {dimension_semantics = [], scalar_prefetch = 0 : i64, scratch_operands = 0 : i64, tpu.core_type = #tpu.core_type<tc>} {
    %c0 = arith.constant 0 : index
    %c0_0 = arith.constant 0 : index
    %c0_1 = arith.constant 0 : index
    %0 = vector.load %arg0[%c0, %c0_0, %c0_1] : memref<1x17x32xf32, #tpu.memory_space<vmem>>, vector<1x17x32xf32>
    %1 = vector.shape_cast %0 : vector<1x17x32xf32> to vector<1x17x32xf32>
    %2 = vector.broadcast %1 : vector<1x17x32xf32> to vector<2x17x32xf32>
    %c0_2 = arith.constant 0 : index
    %c0_3 = arith.constant 0 : index
    %c0_4 = arith.constant 0 : index
    %3 = vector.load %arg1[%c0_2, %c0_3, %c0_4] : memref<2x17x32xf32, #tpu.memory_space<vmem>>, vector<2x17x32xf32>
    tpu.vector_store %arg1[%c0_2, %c0_3, %c0_4], %2 {strides = array<i32>} : memref<2x17x32xf32, #tpu.memory_space<vmem>>, vector<2x17x32xf32>,
    return
  }
}

</mosaic_0001>

<llo_original>
// kernel: positional_embedding_forward.1
$region0: #{positional_embedding_forward.1}
  #allocation0 [shape = 'u32[]', space=smem, size = 0x4, offset = 0x4, fixed_abs, tag = 'smem constant byte address 0x4 - core index']
  #allocation1 [shape = 'u32[144,128]{1,0:T(1,128)}', space=vmem, size = 0x12000, scoped, tag = 'internal scratch']
  %s0 = inlined_call_operand.vmem [shape: f32[1,17,32], index: 0, kind: input, shape index: {}]
  %s1 = inlined_call_operand.vmem [shape: f32[2,17,32], index: 1, kind: output, shape index: {}]
  %s2 = sld [smem:[#allocation0]]
  $region14: #{positional_embedding_forward.1} parent=0
    _
  %s4 = ssub.s32 1, %s2
  %s5 = scalar_select 0, %s4, %s2
  // Predicated region
  $region2: #{positional_embedding_forward.1} parent=0 // pred_check
    _
  $region3: #{positional_embedding_forward.1} parent=0 // pred_check_branch
    %7 = sbr.rel (0) target = $region5
  $region4: #{positional_embedding_forward.1} parent=0 // pred_region
    _
  $region5: #{positional_embedding_forward.1} parent=0 // pred_fallthru
    _
  %v8 = vld [vmem:[%s0] sm:$0xff]
  %v9 = vld [vmem:[%s0 + $0x8] sm:$0xff]
  %v10 = vld [vmem:[%s0 + $0x10] sm:$0x1]
  %vm11 = vcmask 261120
  %12 = vst.msk [vmem:[%s1] sm:$0xff] %vm11, %v8
  %13 = vst.msk [vmem:[%s1 + $0x8] sm:$0xff] %vm11, %v9
  %vm14 = vcmask 253952
  %15 = vst.msk [vmem:[%s1 + $0x10] sm:$0x1] %vm14, %v10
  %16 = vst.msk [vmem:[%s1 + $0x18] sm:$0xff] %vm11, %v8
  %17 = vst.msk [vmem:[%s1 + $0x20] sm:$0xff] %vm11, %v9
  %18 = vst.msk [vmem:[%s1 + $0x28] sm:$0x1] %vm14, %v10
  // Predicated region
  $region6: #{positional_embedding_forward.1} parent=0 // pred_check
    _
  $region7: #{positional_embedding_forward.1} parent=0 // pred_check_branch
    %20 = sbr.rel (0) target = $region9
  $region8: #{positional_embedding_forward.1} parent=0 // pred_region
    _
  $region9: #{positional_embedding_forward.1} parent=0 // pred_fallthru
    _
  // Predicated region
  $region10: #{positional_embedding_forward.1} parent=0 // pred_check
    _
  $region11: #{positional_embedding_forward.1} parent=0 // pred_check_branch
    %22 = sbr.rel (0) target = $region13
  $region12: #{positional_embedding_forward.1} parent=0 // pred_region
    _
  $region13: #{positional_embedding_forward.1} parent=0 // pred_fallthru
    _

</llo_original>
